<compile_context>
chip_gen: v7x
topology: tpu7x:2x2x1
jax: 0.10.0
libtpu: 0.0.40
codegen_flags: <defaults>
</compile_context>

<pallas_src>
import functools

import jax
import jax.numpy as jnp
from jax import lax
from jax.experimental import pallas as pl
from jax.experimental.pallas import tpu as pltpu


def _gather_rows_kernel(tokens_per_step, ids_ref, table_ref, out_ref, sem_ref):
    """DMA-gather `tokens_per_step` embedding rows per grid step.

    ids_ref   : SMEM (N_pad,)            int32   flattened token ids (prefetch)
    table_ref : HBM  (V, W)              uint32  packed embedding table (pl.ANY)
    out_ref   : VMEM (tokens_per_step,W) uint32  packed output tile (pipelined)
    sem_ref   : DMA semaphores (tokens_per_step,)
    """
    base = pl.program_id(0) * tokens_per_step

    # Issue all row fetches first so `tokens_per_step` DMAs are in flight
    # simultaneously (hides per-DMA latency), then wait on all of them before
    # the pipeline writes the output block back to HBM.
    copies = []
    for t in range(tokens_per_step):          # static unroll (small constant)
        row = ids_ref[base + t]
        cp = pltpu.make_async_copy(
            table_ref.at[pl.ds(row, 1), :],   # one table row from HBM
            out_ref.at[pl.ds(t, 1), :],       # directly into the output tile
            sem_ref.at[t],
        )
        cp.start()
        copies.append(cp)
    for cp in copies:
        cp.wait()


def llama_embedding(input_ids, word_embeddings, params_dtype=jnp.bfloat16,
                    tokens_per_step=8):
    """input_ids: [B, S] integer; word_embeddings: [V, H] params_dtype.

    Returns [S, B, H] in params_dtype (matches LLaMaEmbedding.forward output).
    """
    B, S = input_ids.shape
    V, H = word_embeddings.shape
    N = S * B

    table = word_embeddings.astype(params_dtype)
    itemsize = jnp.dtype(params_dtype).itemsize

    # Pack each embedding row into 32-bit words so per-row DMA gathers have no
    # packed-bf16 sub-word alignment concerns (reference: pack 2xbf16 -> u32).
    if itemsize == 4:
        table_u32 = lax.bitcast_convert_type(table, jnp.uint32)
    elif itemsize == 2:
        assert H % 2 == 0, "hidden_size must be even for 2-byte params_dtype"
        table_u32 = lax.bitcast_convert_type(
            table.reshape(V, H // 2, 2), jnp.uint32)
    else:
        raise ValueError(f"unsupported params_dtype itemsize: {itemsize}")
    W = table_u32.shape[1]

    # Output .transpose(0, 1)  ==  gather in seq-major order.
    ids_sb = jnp.transpose(input_ids, (1, 0)).reshape(N).astype(jnp.int32)
    # nn.Embedding faults on out-of-range ids; clamp so the DMA stays in bounds.
    ids_sb = jnp.clip(ids_sb, 0, V - 1)

    tn = tokens_per_step
    n_pad = pl.cdiv(N, tn) * tn
    if n_pad != N:
        ids_sb = jnp.pad(ids_sb, (0, n_pad - N))   # pad with (valid) row 0

    bytes_moved = 2 * N * H * itemsize + n_pad * 4  # read rows + write out + ids

    out_u32 = pl.pallas_call(
        functools.partial(_gather_rows_kernel, tn),
        out_shape=jax.ShapeDtypeStruct((n_pad, W), jnp.uint32),
        grid_spec=pltpu.PrefetchScalarGridSpec(
            num_scalar_prefetch=1,                         # ids -> SMEM
            grid=(n_pad // tn,),                           # token tiles
            in_specs=[pl.BlockSpec(memory_space=pl.ANY)],  # table stays in HBM
            out_specs=pl.BlockSpec((tn, W), lambda i, ids: (i, 0)),
            scratch_shapes=[pltpu.SemaphoreType.DMA((tn,))],
        ),
        compiler_params=pltpu.CompilerParams(
            dimension_semantics=("parallel",),             # shard tokens on v7x
            vmem_limit_bytes=32 * 1024 * 1024,
        ),
        cost_estimate=pl.CostEstimate(
            flops=0, transcendentals=0, bytes_accessed=bytes_moved),
    )(ids_sb, table_u32)

    # Unpack 32-bit words back to params_dtype; trim padding; [S, B, H].
    if itemsize == 4:
        out_flat = lax.bitcast_convert_type(out_u32, params_dtype)
    else:
        out_flat = lax.bitcast_convert_type(out_u32, params_dtype)
        out_flat = out_flat.reshape(n_pad, H)
    out = out_flat[:N].reshape(S, B, H)

    # embedding_weights_in_fp32=True -> exact gather, cast back is a no-op.
    # fp32_residual_connection=False -> keep params_dtype.
    # TODO(synk): training-mode embedding dropout (p>0) via pltpu.prng_seed +
    # pltpu.stateful_bernoulli before returning; identity in eval / p = 0.0.
    return out


if __name__ == "__main__":
    # Config (small, synthetic): hidden_size=32, padded_vocab_size=128,
    # params_dtype=bf16, embedding_weights_in_fp32=True,
    # fp32_residual_connection=False, hidden_dropout=0.0.
    B, S, V, H = 2, 8, 128, 32
    params_dtype = jnp.bfloat16

    key = jax.random.PRNGKey(0)
    k_tab, k_ids = jax.random.split(key)

    word_embeddings = jax.random.normal(k_tab, (V, H), jnp.float32).astype(params_dtype)
    input_ids = jax.random.randint(k_ids, (B, S), 0, V, dtype=jnp.int32)

    out = llama_embedding(input_ids, word_embeddings, params_dtype)
    out = jax.block_until_ready(out)

    # Reference (pure JAX): fp32 gather, cast, transpose(0,1), dropout=identity.
    ref = jnp.take(word_embeddings.astype(jnp.float32), input_ids, axis=0)
    ref = ref.astype(params_dtype)
    ref = jnp.transpose(ref, (1, 0, 2))

    assert out.shape == (S, B, H), out.shape
    assert out.dtype == params_dtype, out.dtype
    assert jnp.array_equal(out.astype(jnp.float32), ref.astype(jnp.float32))

    print("KERNEL_OK")
</pallas_src>

<mosaic_0001>
module attributes {stable_mosaic.version = 11 : i64} {
  func.func @_gather_rows_kernel(%arg0: i32, %arg1: memref<16xi32, #tpu.memory_space<smem>>, %arg2: memref<128x16xi32, #tpu.memory_space<any>>, %arg3: memref<8x16xi32, #tpu.memory_space<vmem>>, %arg4: memref<8x!tpu.dma_semaphore, #tpu.memory_space<semaphore_mem>>) attributes {dimension_semantics = [#tpu.dimension_semantics<parallel>], iteration_bounds = array<i64: 2>, scalar_prefetch = 1 : i64, scratch_operands = 1 : i64, tpu.core_type = #tpu.core_type<tc>, window_params = [{}, {transform_indices = @transform_1, window_bounds = array<i64: 8, 16>}]} {
    %c8_i32 = arith.constant 8 : i32
    %0 = arith.muli %arg0, %c8_i32 : i32
    %c0_i32 = arith.constant 0 : i32
    %1 = arith.addi %0, %c0_i32 : i32
    %2 = arith.index_cast %1 : i32 to index
    %3 = memref.load %arg1[%2] : memref<16xi32, #tpu.memory_space<smem>>
    %c0_i32_0 = arith.constant 0 : i32
    %c0_i32_1 = arith.constant 0 : i32
    %4 = tpu.memref_slice %arg2[%3, %c0_i32_1] : memref<128x16xi32, #tpu.memory_space<any>> -> memref<1x16xi32, #tpu.memory_space<any>>
    %c0_i32_2 = arith.constant 0 : i32
    %c0_i32_3 = arith.constant 0 : i32
    %5 = tpu.memref_slice %arg3[%c0_i32_2, %c0_i32_3] : memref<8x16xi32, #tpu.memory_space<vmem>> -> memref<1x16xi32, #tpu.memory_space<vmem>>
    %6 = tpu.memref_slice %arg4[%c0_i32_0] : memref<8x!tpu.dma_semaphore, #tpu.memory_space<semaphore_mem>> -> memref<1x!tpu.dma_semaphore, #tpu.memory_space<semaphore_mem>>
    %7 = tpu.memref_squeeze %6 : memref<1x!tpu.dma_semaphore, #tpu.memory_space<semaphore_mem>> -> memref<!tpu.dma_semaphore, #tpu.memory_space<semaphore_mem>>
    tpu.enqueue_dma source(%4 : memref<1x16xi32, #tpu.memory_space<any>>) target(%5 : memref<1x16xi32, #tpu.memory_space<vmem>>) target_semaphore(%7 : memref<!tpu.dma_semaphore, #tpu.memory_space<semaphore_mem>>)
    %c1_i32 = arith.constant 1 : i32
    %8 = arith.addi %0, %c1_i32 : i32
    %9 = arith.index_cast %8 : i32 to index
    %10 = memref.load %arg1[%9] : memref<16xi32, #tpu.memory_space<smem>>
    %c1_i32_4 = arith.constant 1 : i32
    %c0_i32_5 = arith.constant 0 : i32
    %11 = tpu.memref_slice %arg2[%10, %c0_i32_5] : memref<128x16xi32, #tpu.memory_space<any>> -> memref<1x16xi32, #tpu.memory_space<any>>
    %c1_i32_6 = arith.constant 1 : i32
    %c0_i32_7 = arith.constant 0 : i32
    %12 = tpu.memref_slice %arg3[%c1_i32_6, %c0_i32_7] : memref<8x16xi32, #tpu.memory_space<vmem>> -> memref<1x16xi32, #tpu.memory_space<vmem>>
    %13 = tpu.memref_slice %arg4[%c1_i32_4] : memref<8x!tpu.dma_semaphore, #tpu.memory_space<semaphore_mem>> -> memref<1x!tpu.dma_semaphore, #tpu.memory_space<semaphore_mem>>
    %14 = tpu.memref_squeeze %13 : memref<1x!tpu.dma_semaphore, #tpu.memory_space<semaphore_mem>> -> memref<!tpu.dma_semaphore, #tpu.memory_space<semaphore_mem>>
    tpu.enqueue_dma source(%11 : memref<1x16xi32, #tpu.memory_space<any>>) target(%12 : memref<1x16xi32, #tpu.memory_space<vmem>>) target_semaphore(%14 : memref<!tpu.dma_semaphore, #tpu.memory_space<semaphore_mem>>)
    %c2_i32 = arith.constant 2 : i32
    %15 = arith.addi %0, %c2_i32 : i32
    %16 = arith.index_cast %15 : i32 to index
    %17 = memref.load %arg1[%16] : memref<16xi32, #tpu.memory_space<smem>>
    %c2_i32_8 = arith.constant 2 : i32
    %c0_i32_9 = arith.constant 0 : i32
    %18 = tpu.memref_slice %arg2[%17, %c0_i32_9] : memref<128x16xi32, #tpu.memory_space<any>> -> memref<1x16xi32, #tpu.memory_space<any>>
    %c2_i32_10 = arith.constant 2 : i32
    %c0_i32_11 = arith.constant 0 : i32
    %19 = tpu.memref_slice %arg3[%c2_i32_10, %c0_i32_11] : memref<8x16xi32, #tpu.memory_space<vmem>> -> memref<1x16xi32, #tpu.memory_space<vmem>>
    %20 = tpu.memref_slice %arg4[%c2_i32_8] : memref<8x!tpu.dma_semaphore, #tpu.memory_space<semaphore_mem>> -> memref<1x!tpu.dma_semaphore, #tpu.memory_space<semaphore_mem>>
    %21 = tpu.memref_squeeze %20 : memref<1x!tpu.dma_semaphore, #tpu.memory_space<semaphore_mem>> -> memref<!tpu.dma_semaphore, #tpu.memory_space<semaphore_mem>>
    tpu.enqueue_dma source(%18 : memref<1x16xi32, #tpu.memory_space<any>>) target(%19 : memref<1x16xi32, #tpu.memory_space<vmem>>) target_semaphore(%21 : memref<!tpu.dma_semaphore, #tpu.memory_space<semaphore_mem>>)
    %c3_i32 = arith.constant 3 : i32
    %22 = arith.addi %0, %c3_i32 : i32
    %23 = arith.index_cast %22 : i32 to index
    %24 = memref.load %arg1[%23] : memref<16xi32, #tpu.memory_space<smem>>
    %c3_i32_12 = arith.constant 3 : i32
    %c0_i32_13 = arith.constant 0 : i32
    %25 = tpu.memref_slice %arg2[%24, %c0_i32_13] : memref<128x16xi32, #tpu.memory_space<any>> -> memref<1x16xi32, #tpu.memory_space<any>>
    %c3_i32_14 = arith.constant 3 : i32
    %c0_i32_15 = arith.constant 0 : i32
    %26 = tpu.memref_slice %arg3[%c3_i32_14, %c0_i32_15] : memref<8x16xi32, #tpu.memory_space<vmem>> -> memref<1x16xi32, #tpu.memory_space<vmem>>
    %27 = tpu.memref_slice %arg4[%c3_i32_12] : memref<8x!tpu.dma_semaphore, #tpu.memory_space<semaphore_mem>> -> memref<1x!tpu.dma_semaphore, #tpu.memory_space<semaphore_mem>>
    %28 = tpu.memref_squeeze %27 : memref<1x!tpu.dma_semaphore, #tpu.memory_space<semaphore_mem>> -> memref<!tpu.dma_semaphore, #tpu.memory_space<semaphore_mem>>
    tpu.enqueue_dma source(%25 : memref<1x16xi32, #tpu.memory_space<any>>) target(%26 : memref<1x16xi32, #tpu.memory_space<vmem>>) target_semaphore(%28 : memref<!tpu.dma_semaphore, #tpu.memory_space<semaphore_mem>>)
    %c4_i32 = arith.constant 4 : i32
    %29 = arith.addi %0, %c4_i32 : i32
    %30 = arith.index_cast %29 : i32 to index
    %31 = memref.load %arg1[%30] : memref<16xi32, #tpu.memory_space<smem>>
    %c4_i32_16 = arith.constant 4 : i32
    %c0_i32_17 = arith.constant 0 : i32
    %32 = tpu.memref_slice %arg2[%31, %c0_i32_17] : memref<128x16xi32, #tpu.memory_space<any>> -> memref<1x16xi32, #tpu.memory_space<any>>
    %c4_i32_18 = arith.constant 4 : i32
    %c0_i32_19 = arith.constant 0 : i32
    %33 = tpu.memref_slice %arg3[%c4_i32_18, %c0_i32_19] : memref<8x16xi32, #tpu.memory_space<vmem>> -> memref<1x16xi32, #tpu.memory_space<vmem>>
    %34 = tpu.memref_slice %arg4[%c4_i32_16] : memref<8x!tpu.dma_semaphore, #tpu.memory_space<semaphore_mem>> -> memref<1x!tpu.dma_semaphore, #tpu.memory_space<semaphore_mem>>
    %35 = tpu.memref_squeeze %34 : memref<1x!tpu.dma_semaphore, #tpu.memory_space<semaphore_mem>> -> memref<!tpu.dma_semaphore, #tpu.memory_space<semaphore_mem>>
    tpu.enqueue_dma source(%32 : memref<1x16xi32, #tpu.memory_space<any>>) target(%33 : memref<1x16xi32, #tpu.memory_space<vmem>>) target_semaphore(%35 : memref<!tpu.dma_semaphore, #tpu.memory_space<semaphore_mem>>)
    %c5_i32 = arith.constant 5 : i32
    %36 = arith.addi %0, %c5_i32 : i32
    %37 = arith.index_cast %36 : i32 to index
    %38 = memref.load %arg1[%37] : memref<16xi32, #tpu.memory_space<smem>>
    %c5_i32_20 = arith.constant 5 : i32
    %c0_i32_21 = arith.constant 0 : i32
    %39 = tpu.memref_slice %arg2[%38, %c0_i32_21] : memref<128x16xi32, #tpu.memory_space<any>> -> memref<1x16xi32, #tpu.memory_space<any>>
    %c5_i32_22 = arith.constant 5 : i32
    %c0_i32_23 = arith.constant 0 : i32
    %40 = tpu.memref_slice %arg3[%c5_i32_22, %c0_i32_23] : memref<8x16xi32, #tpu.memory_space<vmem>> -> memref<1x16xi32, #tpu.memory_space<vmem>>
    %41 = tpu.memref_slice %arg4[%c5_i32_20] : memref<8x!tpu.dma_semaphore, #tpu.memory_space<semaphore_mem>> -> memref<1x!tpu.dma_semaphore, #tpu.memory_space<semaphore_mem>>
    %42 = tpu.memref_squeeze %41 : memref<1x!tpu.dma_semaphore, #tpu.memory_space<semaphore_mem>> -> memref<!tpu.dma_semaphore, #tpu.memory_space<semaphore_mem>>
    tpu.enqueue_dma source(%39 : memref<1x16xi32, #tpu.memory_space<any>>) target(%40 : memref<1x16xi32, #tpu.memory_space<vmem>>) target_semaphore(%42 : memref<!tpu.dma_semaphore, #tpu.memory_space<semaphore_mem>>)
    %c6_i32 = arith.constant 6 : i32
    %43 = arith.addi %0, %c6_i32 : i32
    %44 = arith.index_cast %43 : i32 to index
    %45 = memref.load %arg1[%44] : memref<16xi32, #tpu.memory_space<smem>>
    %c6_i32_24 = arith.constant 6 : i32
    %c0_i32_25 = arith.constant 0 : i32
    %46 = tpu.memref_slice %arg2[%45, %c0_i32_25] : memref<128x16xi32, #tpu.memory_space<any>> -> memref<1x16xi32, #tpu.memory_space<any>>
    %c6_i32_26 = arith.constant 6 : i32
    %c0_i32_27 = arith.constant 0 : i32
    %47 = tpu.memref_slice %arg3[%c6_i32_26, %c0_i32_27] : memref<8x16xi32, #tpu.memory_space<vmem>> -> memref<1x16xi32, #tpu.memory_space<vmem>>
    %48 = tpu.memref_slice %arg4[%c6_i32_24] : memref<8x!tpu.dma_semaphore, #tpu.memory_space<semaphore_mem>> -> memref<1x!tpu.dma_semaphore, #tpu.memory_space<semaphore_mem>>
    %49 = tpu.memref_squeeze %48 : memref<1x!tpu.dma_semaphore, #tpu.memory_space<semaphore_mem>> -> memref<!tpu.dma_semaphore, #tpu.memory_space<semaphore_mem>>
    tpu.enqueue_dma source(%46 : memref<1x16xi32, #tpu.memory_space<any>>) target(%47 : memref<1x16xi32, #tpu.memory_space<vmem>>) target_semaphore(%49 : memref<!tpu.dma_semaphore, #tpu.memory_space<semaphore_mem>>)
    %c7_i32 = arith.constant 7 : i32
    %50 = arith.addi %0, %c7_i32 : i32
    %51 = arith.index_cast %50 : i32 to index
    %52 = memref.load %arg1[%51] : memref<16xi32, #tpu.memory_space<smem>>
    %c7_i32_28 = arith.constant 7 : i32
    %c0_i32_29 = arith.constant 0 : i32
    %53 = tpu.memref_slice %arg2[%52, %c0_i32_29] : memref<128x16xi32, #tpu.memory_space<any>> -> memref<1x16xi32, #tpu.memory_space<any>>
    %c7_i32_30 = arith.constant 7 : i32
    %c0_i32_31 = arith.constant 0 : i32
    %54 = tpu.memref_slice %arg3[%c7_i32_30, %c0_i32_31] : memref<8x16xi32, #tpu.memory_space<vmem>> -> memref<1x16xi32, #tpu.memory_space<vmem>>
    %55 = tpu.memref_slice %arg4[%c7_i32_28] : memref<8x!tpu.dma_semaphore, #tpu.memory_space<semaphore_mem>> -> memref<1x!tpu.dma_semaphore, #tpu.memory_space<semaphore_mem>>
    %56 = tpu.memref_squeeze %55 : memref<1x!tpu.dma_semaphore, #tpu.memory_space<semaphore_mem>> -> memref<!tpu.dma_semaphore, #tpu.memory_space<semaphore_mem>>
    tpu.enqueue_dma source(%53 : memref<1x16xi32, #tpu.memory_space<any>>) target(%54 : memref<1x16xi32, #tpu.memory_space<vmem>>) target_semaphore(%56 : memref<!tpu.dma_semaphore, #tpu.memory_space<semaphore_mem>>)
    %c0_i32_32 = arith.constant 0 : i32
    %c0_i32_33 = arith.constant 0 : i32
    %57 = tpu.memref_slice %arg2[%3, %c0_i32_33] : memref<128x16xi32, #tpu.memory_space<any>> -> memref<1x16xi32, #tpu.memory_space<any>>
    %c0_i32_34 = arith.constant 0 : i32
    %c0_i32_35 = arith.constant 0 : i32
    %58 = tpu.memref_slice %arg3[%c0_i32_34, %c0_i32_35] : memref<8x16xi32, #tpu.memory_space<vmem>> -> memref<1x16xi32, #tpu.memory_space<vmem>>
    %59 = tpu.memref_slice %arg4[%c0_i32_32] : memref<8x!tpu.dma_semaphore, #tpu.memory_space<semaphore_mem>> -> memref<1x!tpu.dma_semaphore, #tpu.memory_space<semaphore_mem>>
    %60 = tpu.memref_squeeze %59 : memref<1x!tpu.dma_semaphore, #tpu.memory_space<semaphore_mem>> -> memref<!tpu.dma_semaphore, #tpu.memory_space<semaphore_mem>>
    tpu.wait_dma2 semaphore(%60 : memref<!tpu.dma_semaphore, #tpu.memory_space<semaphore_mem>>) src(%57 : memref<1x16xi32, #tpu.memory_space<any>>) dst(%58 : memref<1x16xi32, #tpu.memory_space<vmem>>)
    %c1_i32_36 = arith.constant 1 : i32
    %c0_i32_37 = arith.constant 0 : i32
    %61 = tpu.memref_slice %arg2[%10, %c0_i32_37] : memref<128x16xi32, #tpu.memory_space<any>> -> memref<1x16xi32, #tpu.memory_space<any>>
    %c1_i32_38 = arith.constant 1 : i32
    %c0_i32_39 = arith.constant 0 : i32
    %62 = tpu.memref_slice %arg3[%c1_i32_38, %c0_i32_39] : memref<8x16xi32, #tpu.memory_space<vmem>> -> memref<1x16xi32, #tpu.memory_space<vmem>>
    %63 = tpu.memref_slice %arg4[%c1_i32_36] : memref<8x!tpu.dma_semaphore, #tpu.memory_space<semaphore_mem>> -> memref<1x!tpu.dma_semaphore, #tpu.memory_space<semaphore_mem>>
    %64 = tpu.memref_squeeze %63 : memref<1x!tpu.dma_semaphore, #tpu.memory_space<semaphore_mem>> -> memref<!tpu.dma_semaphore, #tpu.memory_space<semaphore_mem>>
    tpu.wait_dma2 semaphore(%64 : memref<!tpu.dma_semaphore, #tpu.memory_space<semaphore_mem>>) src(%61 : memref<1x16xi32, #tpu.memory_space<any>>) dst(%62 : memref<1x16xi32, #tpu.memory_space<vmem>>)
    %c2_i32_40 = arith.constant 2 : i32
    %c0_i32_41 = arith.constant 0 : i32
    %65 = tpu.memref_slice %arg2[%17, %c0_i32_41] : memref<128x16xi32, #tpu.memory_space<any>> -> memref<1x16xi32, #tpu.memory_space<any>>
    %c2_i32_42 = arith.constant 2 : i32
    %c0_i32_43 = arith.constant 0 : i32
    %66 = tpu.memref_slice %arg3[%c2_i32_42, %c0_i32_43] : memref<8x16xi32, #tpu.memory_space<vmem>> -> memref<1x16xi32, #tpu.memory_space<vmem>>
    %67 = tpu.memref_slice %arg4[%c2_i32_40] : memref<8x!tpu.dma_semaphore, #tpu.memory_space<semaphore_mem>> -> memref<1x!tpu.dma_semaphore, #tpu.memory_space<semaphore_mem>>
    %68 = tpu.memref_squeeze %67 : memref<1x!tpu.dma_semaphore, #tpu.memory_space<semaphore_mem>> -> memref<!tpu.dma_semaphore, #tpu.memory_space<semaphore_mem>>
    tpu.wait_dma2 semaphore(%68 : memref<!tpu.dma_semaphore, #tpu.memory_space<semaphore_mem>>) src(%65 : memref<1x16xi32, #tpu.memory_space<any>>) dst(%66 : memref<1x16xi32, #tpu.memory_space<vmem>>)
    %c3_i32_44 = arith.constant 3 : i32
    %c0_i32_45 = arith.constant 0 : i32
    %69 = tpu.memref_slice %arg2[%24, %c0_i32_45] : memref<128x16xi32, #tpu.memory_space<any>> -> memref<1x16xi32, #tpu.memory_space<any>>
    %c3_i32_46 = arith.constant 3 : i32
    %c0_i32_47 = arith.constant 0 : i32
    %70 = tpu.memref_slice %arg3[%c3_i32_46, %c0_i32_47] : memref<8x16xi32, #tpu.memory_space<vmem>> -> memref<1x16xi32, #tpu.memory_space<vmem>>
    %71 = tpu.memref_slice %arg4[%c3_i32_44] : memref<8x!tpu.dma_semaphore, #tpu.memory_space<semaphore_mem>> -> memref<1x!tpu.dma_semaphore, #tpu.memory_space<semaphore_mem>>
    %72 = tpu.memref_squeeze %71 : memref<1x!tpu.dma_semaphore, #tpu.memory_space<semaphore_mem>> -> memref<!tpu.dma_semaphore, #tpu.memory_space<semaphore_mem>>
    tpu.wait_dma2 semaphore(%72 : memref<!tpu.dma_semaphore, #tpu.memory_space<semaphore_mem>>) src(%69 : memref<1x16xi32, #tpu.memory_space<any>>) dst(%70 : memref<1x16xi32, #tpu.memory_space<vmem>>)
    %c4_i32_48 = arith.constant 4 : i32
    %c0_i32_49 = arith.constant 0 : i32
    %73 = tpu.memref_slice %arg2[%31, %c0_i32_49] : memref<128x16xi32, #tpu.memory_space<any>> -> memref<1x16xi32, #tpu.memory_space<any>>
    %c4_i32_50 = arith.constant 4 : i32
    %c0_i32_51 = arith.constant 0 : i32
    %74 = tpu.memref_slice %arg3[%c4_i32_50, %c0_i32_51] : memref<8x16xi32, #tpu.memory_space<vmem>> -> memref<1x16xi32, #tpu.memory_space<vmem>>
    %75 = tpu.memref_slice %arg4[%c4_i32_48] : memref<8x!tpu.dma_semaphore, #tpu.memory_space<semaphore_mem>> -> memref<1x!tpu.dma_semaphore, #tpu.memory_space<semaphore_mem>>
    %76 = tpu.memref_squeeze %75 : memref<1x!tpu.dma_semaphore, #tpu.memory_space<semaphore_mem>> -> memref<!tpu.dma_semaphore, #tpu.memory_space<semaphore_mem>>
    tpu.wait_dma2 semaphore(%76 : memref<!tpu.dma_semaphore, #tpu.memory_space<semaphore_mem>>) src(%73 : memref<1x16xi32, #tpu.memory_space<any>>) dst(%74 : memref<1x16xi32, #tpu.memory_space<vmem>>)
    %c5_i32_52 = arith.constant 5 : i32
    %c0_i32_53 = arith.constant 0 : i32
    %77 = tpu.memref_slice %arg2[%38, %c0_i32_53] : memref<128x16xi32, #tpu.memory_space<any>> -> memref<1x16xi32, #tpu.memory_space<any>>
    %c5_i32_54 = arith.constant 5 : i32
    %c0_i32_55 = arith.constant 0 : i32
    %78 = tpu.memref_slice %arg3[%c5_i32_54, %c0_i32_55] : memref<8x16xi32, #tpu.memory_space<vmem>> -> memref<1x16xi32, #tpu.memory_space<vmem>>
    %79 = tpu.memref_slice %arg4[%c5_i32_52] : memref<8x!tpu.dma_semaphore, #tpu.memory_space<semaphore_mem>> -> memref<1x!tpu.dma_semaphore, #tpu.memory_space<semaphore_mem>>
    %80 = tpu.memref_squeeze %79 : memref<1x!tpu.dma_semaphore, #tpu.memory_space<semaphore_mem>> -> memref<!tpu.dma_semaphore, #tpu.memory_space<semaphore_mem>>
    tpu.wait_dma2 semaphore(%80 : memref<!tpu.dma_semaphore, #tpu.memory_space<semaphore_mem>>) src(%77 : memref<1x16xi32, #tpu.memory_space<any>>) dst(%78 : memref<1x16xi32, #tpu.memory_space<vmem>>)
    %c6_i32_56 = arith.constant 6 : i32
    %c0_i32_57 = arith.constant 0 : i32
    %81 = tpu.memref_slice %arg2[%45, %c0_i32_57] : memref<128x16xi32, #tpu.memory_space<any>> -> memref<1x16xi32, #tpu.memory_space<any>>
    %c6_i32_58 = arith.constant 6 : i32
    %c0_i32_59 = arith.constant 0 : i32
    %82 = tpu.memref_slice %arg3[%c6_i32_58, %c0_i32_59] : memref<8x16xi32, #tpu.memory_space<vmem>> -> memref<1x16xi32, #tpu.memory_space<vmem>>
    %83 = tpu.memref_slice %arg4[%c6_i32_56] : memref<8x!tpu.dma_semaphore, #tpu.memory_space<semaphore_mem>> -> memref<1x!tpu.dma_semaphore, #tpu.memory_space<semaphore_mem>>
    %84 = tpu.memref_squeeze %83 : memref<1x!tpu.dma_semaphore, #tpu.memory_space<semaphore_mem>> -> memref<!tpu.dma_semaphore, #tpu.memory_space<semaphore_mem>>
    tpu.wait_dma2 semaphore(%84 : memref<!tpu.dma_semaphore, #tpu.memory_space<semaphore_mem>>) src(%81 : memref<1x16xi32, #tpu.memory_space<any>>) dst(%82 : memref<1x16xi32, #tpu.memory_space<vmem>>)
    %c7_i32_60 = arith.constant 7 : i32
    %c0_i32_61 = arith.constant 0 : i32
    %85 = tpu.memref_slice %arg2[%52, %c0_i32_61] : memref<128x16xi32, #tpu.memory_space<any>> -> memref<1x16xi32, #tpu.memory_space<any>>
    %c7_i32_62 = arith.constant 7 : i32
    %c0_i32_63 = arith.constant 0 : i32
    %86 = tpu.memref_slice %arg3[%c7_i32_62, %c0_i32_63] : memref<8x16xi32, #tpu.memory_space<vmem>> -> memref<1x16xi32, #tpu.memory_space<vmem>>
    %87 = tpu.memref_slice %arg4[%c7_i32_60] : memref<8x!tpu.dma_semaphore, #tpu.memory_space<semaphore_mem>> -> memref<1x!tpu.dma_semaphore, #tpu.memory_space<semaphore_mem>>
    %88 = tpu.memref_squeeze %87 : memref<1x!tpu.dma_semaphore, #tpu.memory_space<semaphore_mem>> -> memref<!tpu.dma_semaphore, #tpu.memory_space<semaphore_mem>>
    tpu.wait_dma2 semaphore(%88 : memref<!tpu.dma_semaphore, #tpu.memory_space<semaphore_mem>>) src(%85 : memref<1x16xi32, #tpu.memory_space<any>>) dst(%86 : memref<1x16xi32, #tpu.memory_space<vmem>>)
    return
  }
  func.func @transform_1(%arg0: i32, %arg1: memref<16xi32, #tpu.memory_space<smem>>) -> (i32, i32) {
    %c0_i32 = arith.constant 0 : i32
    %c0_i32_0 = arith.constant 0 : i32
    return %arg0, %c0_i32 : i32, i32
  }
}

</mosaic_0001>

<llo_original>
// kernel: tpu_custom_call.1
$region0: #{tpu_custom_call.1}
  #allocation0 [shape = 'u32[]', space=smem, size = 0x4, offset = 0x4, fixed_abs, tag = 'smem constant byte address 0x4 - core index']
  #allocation1 [shape = 'u32[144,128]{1,0:T(1,128)}', space=vmem, size = 0x12000, scoped, tag = 'internal scratch']
  #allocation2 [shape = 's32[8]{0}', space=sflag, size = 0x20, scoped, tag = 'scratch operand']
  #allocation3 [shape = 's32[1]{0}', space=sflag, size = 0x4, scoped, tag = 'scoped memory for tpu_custom_call.1']
  #allocation4 [shape = 'u8[512]{0}', space=smem, size = 0x200, scoped, tag = 'prefetched SMEM operand 0']
  #allocation7 [shape = 's32[]', space=sflag, size = 0x4, offset = 0, fixed_abs, tag = 'sflag constant byte address 0x0 - dummy sync flag']
  #allocation8 [shape = 's32[]', space=sflag, size = 0x4, offset = 0, fixed_abs, tag = 'sflag constant byte address 0x0 - dummy sync flag']
  #allocation9 [shape = 's32[]', space=sflag, size = 0x4, offset = 0, fixed_abs, tag = 'sflag constant byte address 0x0 - dummy sync flag']
  #allocation10 [shape = 's32[]', space=sflag, size = 0x4, offset = 0, fixed_abs, tag = 'sflag constant byte address 0x0 - dummy sync flag']
  #allocation11 [shape = 's32[]', space=sflag, size = 0x4, offset = 0, fixed_abs, tag = 'sflag constant byte address 0x0 - dummy sync flag']
  #allocation12 [shape = 's32[]', space=sflag, size = 0x4, offset = 0, fixed_abs, tag = 'sflag constant byte address 0x0 - dummy sync flag']
  #allocation13 [shape = 's32[]', space=sflag, size = 0x4, offset = 0, fixed_abs, tag = 'sflag constant byte address 0x0 - dummy sync flag']
  #allocation14 [shape = 's32[]', space=sflag, size = 0x4, offset = 0, fixed_abs, tag = 'sflag constant byte address 0x0 - dummy sync flag']
  %s0 = inlined_call_operand.vmem [shape: s32[16], index: 0, kind: input, shape index: {}]
  %s1 = inlined_call_operand.vmem [shape: u32[128,16], index: 1, kind: input, shape index: {}]
  %s2 = inlined_call_operand.hbm [shape: u32[16,16], index: 2, kind: output, shape index: {}]
  %s3 = sld [smem:[#allocation0]]
  $region265: #{tpu_custom_call.1} parent=0
    _
  %s5 = ssub.s32 1, %s3
  %s6 = scalar_select 0, %s5, %s3
  %s7 = sshll.u32 %s0, 4
  %s8 = int_to_ptr.vmem [resolvable:$true] %s7
  %10 = dma.vmem_to_smem %s8, 16, [#allocation4], [#allocation3]
  %11 = dma.done [#allocation3], 16
  %12 = sfence
  $region1: #{tpu_custom_call.1} parent=0
    #allocation5 [shape = 'u8[8192]{0}', space=vmem, size = 0x2000, scoped, tag = 'output window, operand 0']
    #allocation6 [shape = 's32[2]{0}', space=sflag, size = 0x8, scoped, tag = 'scoped memory for tpu_custom_call.1']
    %13 = vsyncpa [#allocation6], 0
    %s14 = scalar_lea.sflag [#allocation6], 1
    %15 = vsyncpa %s14, 0
    loop: start=0, step=1, limit=3
    $region2: #{tpu_custom_call.1} parent=1 // loop_pre_header
      _
    $region3: #{tpu_custom_call.1} parent=1 // loop_header
      %s17 = sphi 0, %s21
      %p18 = scmp.ge.s32.totalorder %s17, 3
      %s26 = sphi 0, %s28
      %s29 = sphi 0, %s26
      %s39 = sphi 0, %s29
    $region4: #{tpu_custom_call.1} parent=1 // loop_header_branch
      %20 = sbr.rel (%p18) target = $region8
    $region5: #{tpu_custom_call.1} parent=1 // loop_body
      %s22 = ssub.s32 %s17, 1
      %s23 = sadd.s32 %s17, 1
      %s24 = ssub.s32 %s17, %s23
      %p25 = scmp.eq.s32.totalorder %s24, 0
      %s27 = sadd.s32 %s26, 1
      %s28 = scalar_select %p25, %s26, %s27
      %p30 = pneg %p25
      %p31 = scmp.eq.s32.totalorder %s17, 1
      %p32 = por %p30, %p31
      %p33 = scmp.ne.s32.totalorder %s26, %s29
      %p34 = scmp.eq.s32.totalorder %s17, 0
      %p35 = por %p33, %p34
      %p36 = scmp.ne.s32.totalorder %s26, %s29
      %p37 = scmp.eq.s32.totalorder %s22, 1
      %p38 = por %p36, %p37
      %p40 = scmp.ne.s32.totalorder %s29, %s39
      %p41 = scmp.eq.s32.totalorder %s22, 0
      %p42 = por %p40, %p41
      %p43 = scmp.lt.s32.totalorder %s17, 2
      // Predicated region
      $region9: #{tpu_custom_call.1} parent=5 // pred_check
        %p44 = pneg %p43
      $region10: #{tpu_custom_call.1} parent=5 // pred_check_branch
        %46 = sbr.rel (%p44) target = $region12
      $region11: #{tpu_custom_call.1} parent=5 // pred_region
        %p47 = pneg %p35
        %p48 = pneg %p32
        %s49 = sand.u32 %s26, 1
        %s50 = scalar_lea.sflag [#allocation6], %s49
        %s51 = sand.u32 %s26, 1
        %s52 = smul.addr %s51, 8
        %s53 = scalar_lea.vmem [#allocation5], %s52
        %s54 = smul.u32 %s17, 8
        %s55 = sld [smem:[#allocation4 + %s54]]
        %s56 = scalar_lea.vmem %s1, %s55
        %p58 = scmp.lt.u32.totalorder 1, 8
        %p59 = pneg %p58
        // Predicated region
        $region13: #{tpu_custom_call.1} parent=11 // pred_check
          _
        $region14: #{tpu_custom_call.1} parent=11 // pred_check_branch
          %61 = sbr.rel (%p58) target = $region16
        $region15: #{tpu_custom_call.1} parent=11 // pred_region
          %s76 = sand.u32 1, 7
          %p77 = scmp.eq.s32.totalorder %s76, 0
          %p78 = pneg %p77
          // Predicated region
          $region28: #{tpu_custom_call.1} parent=15 // pred_check
            _
          $region29: #{tpu_custom_call.1} parent=15 // pred_check_branch
            %80 = sbr.rel (%p77) target = $region31
          $region30: #{tpu_custom_call.1} parent=15 // pred_region
            %s81 = sand.u32 1, 7
            %s82 = ssub.s32 1, %s81
            %s83 = scalar_lea.vmem %s56, %s82
            %s84 = ssub.s32 1, %s81
            %s85 = scalar_lea.vmem %s53, %s84 [#allocation5]
            %s86 = sshllo.u32 0, %s81
            loop: start=0, step=1, limit=1
            $region32: #{tpu_custom_call.1} parent=30 // loop_pre_header
              _
            $region33: #{tpu_custom_call.1} parent=30 // loop_header
              %s88 = sphi 0, %s92
              %p89 = scmp.ge.s32.totalorder %s88, 1
              %s93 = sphi %s83, %s83
              %s94 = sphi %s85, %s85
            $region34: #{tpu_custom_call.1} parent=30 // loop_header_branch
              %91 = sbr.rel (%p89) target = $region38
            $region35: #{tpu_custom_call.1} parent=30 // loop_body
              %v95 = vld [vmem:[%s93] sm:%s86]
              %96 = vst [vmem:[%s94] sm:%s86] %v95
            $region36: #{tpu_custom_call.1} parent=30 // loop_footer
              %s92 = sadd.s32 1, %s88
            $region37: #{tpu_custom_call.1} parent=30 // loop_footer_branch
              %87 = sbr.rel target = $region33
            $region38: #{tpu_custom_call.1} parent=30 // loop_exit
              _
          $region31: #{tpu_custom_call.1} parent=15 // pred_fallthru
            _
        $region16: #{tpu_custom_call.1} parent=11 // pred_fallthru
          _
        // Predicated region
        $region17: #{tpu_custom_call.1} parent=11 // pred_check
          %p62 = pneg %p58
        $region18: #{tpu_custom_call.1} parent=11 // pred_check_branch
          %64 = sbr.rel (%p62) target = $region20
        $region19: #{tpu_custom_call.1} parent=11 // pred_region
          %s65 = sshllo.u32 0, 1
          loop: start=0, step=1, limit=1
          $region21: #{tpu_custom_call.1} parent=19 // loop_pre_header
            _
          $region22: #{tpu_custom_call.1} parent=19 // loop_header
            %s67 = sphi 0, %s71
            %p68 = scmp.ge.s32.totalorder %s67, 1
            %s72 = sphi %s56, %s56
            %s73 = sphi %s53, %s53
          $region23: #{tpu_custom_call.1} parent=19 // loop_header_branch
            %70 = sbr.rel (%p68) target = $region27
          $region24: #{tpu_custom_call.1} parent=19 // loop_body
            %v74 = vld [vmem:[%s72] sm:%s65]
            %75 = vst [vmem:[%s73] sm:%s65] %v74
          $region25: #{tpu_custom_call.1} parent=19 // loop_footer
            %s71 = sadd.s32 1, %s67
          $region26: #{tpu_custom_call.1} parent=19 // loop_footer_branch
            %66 = sbr.rel target = $region22
          $region27: #{tpu_custom_call.1} parent=19 // loop_exit
            _
        $region20: #{tpu_custom_call.1} parent=11 // pred_fallthru
          _
        // Predicated region
        $region39: #{tpu_custom_call.1} parent=11 // pred_check
          _
        $region40: #{tpu_custom_call.1} parent=11 // pred_check_branch
          %99 = sbr.rel (0) target = $region42
        $region41: #{tpu_custom_call.1} parent=11 // pred_region
          %100 = vsyncadd [#allocation2], 16
        $region42: #{tpu_custom_call.1} parent=11 // pred_fallthru
          _
        %s101 = sadd.s32 %s54, 1
        %s102 = sld [smem:[#allocation4 + %s101]]
        %s103 = scalar_lea.vmem %s1, %s102
        %s104 = scalar_lea.vmem %s53, 1 [#allocation5]
        %s105 = scalar_lea.sflag [#allocation2], 1
        %p107 = scmp.lt.u32.totalorder 1, 8
        %p108 = pneg %p107
        // Predicated region
        $region43: #{tpu_custom_call.1} parent=11 // pred_check
          _
        $region44: #{tpu_custom_call.1} parent=11 // pred_check_branch
          %110 = sbr.rel (%p107) target = $region46
        $region45: #{tpu_custom_call.1} parent=11 // pred_region
          %s125 = sand.u32 1, 7
          %p126 = scmp.eq.s32.totalorder %s125, 0
          %p127 = pneg %p126
          // Predicated region
          $region58: #{tpu_custom_call.1} parent=45 // pred_check
            _
          $region59: #{tpu_custom_call.1} parent=45 // pred_check_branch
            %129 = sbr.rel (%p126) target = $region61
          $region60: #{tpu_custom_call.1} parent=45 // pred_region
            %s130 = sand.u32 1, 7
            %s131 = ssub.s32 1, %s130
            %s132 = scalar_lea.vmem %s103, %s131
            %s133 = ssub.s32 1, %s130
            %s134 = scalar_lea.vmem %s104, %s133 [#allocation5]
            %s135 = sshllo.u32 0, %s130
            loop: start=0, step=1, limit=1
            $region62: #{tpu_custom_call.1} parent=60 // loop_pre_header
              _
            $region63: #{tpu_custom_call.1} parent=60 // loop_header
              %s137 = sphi 0, %s141
              %p138 = scmp.ge.s32.totalorder %s137, 1
              %s142 = sphi %s132, %s132
              %s143 = sphi %s134, %s134
            $region64: #{tpu_custom_call.1} parent=60 // loop_header_branch
              %140 = sbr.rel (%p138) target = $region68
            $region65: #{tpu_custom_call.1} parent=60 // loop_body
              %v144 = vld [vmem:[%s142] sm:%s135]
              %145 = vst [vmem:[%s143] sm:%s135] %v144
            $region66: #{tpu_custom_call.1} parent=60 // loop_footer
              %s141 = sadd.s32 1, %s137
            $region67: #{tpu_custom_call.1} parent=60 // loop_footer_branch
              %136 = sbr.rel target = $region63
            $region68: #{tpu_custom_call.1} parent=60 // loop_exit
              _
          $region61: #{tpu_custom_call.1} parent=45 // pred_fallthru
            _
        $region46: #{tpu_custom_call.1} parent=11 // pred_fallthru
          _
        // Predicated region
        $region47: #{tpu_custom_call.1} parent=11 // pred_check
          %p111 = pneg %p107
        $region48: #{tpu_custom_call.1} parent=11 // pred_check_branch
          %113 = sbr.rel (%p111) target = $region50
        $region49: #{tpu_custom_call.1} parent=11 // pred_region
          %s114 = sshllo.u32 0, 1
          loop: start=0, step=1, limit=1
          $region51: #{tpu_custom_call.1} parent=49 // loop_pre_header
            _
          $region52: #{tpu_custom_call.1} parent=49 // loop_header
            %s116 = sphi 0, %s120
            %p117 = scmp.ge.s32.totalorder %s116, 1
            %s121 = sphi %s103, %s103
            %s122 = sphi %s104, %s104
          $region53: #{tpu_custom_call.1} parent=49 // loop_header_branch
            %119 = sbr.rel (%p117) target = $region57
          $region54: #{tpu_custom_call.1} parent=49 // loop_body
            %v123 = vld [vmem:[%s121] sm:%s114]
            %124 = vst [vmem:[%s122] sm:%s114] %v123
          $region55: #{tpu_custom_call.1} parent=49 // loop_footer
            %s120 = sadd.s32 1, %s116
          $region56: #{tpu_custom_call.1} parent=49 // loop_footer_branch
            %115 = sbr.rel target = $region52
          $region57: #{tpu_custom_call.1} parent=49 // loop_exit
            _
        $region50: #{tpu_custom_call.1} parent=11 // pred_fallthru
          _
        // Predicated region
        $region69: #{tpu_custom_call.1} parent=11 // pred_check
          _
        $region70: #{tpu_custom_call.1} parent=11 // pred_check_branch
          %148 = sbr.rel (0) target = $region72
        $region71: #{tpu_custom_call.1} parent=11 // pred_region
          %149 = vsyncadd %s105, 16
        $region72: #{tpu_custom_call.1} parent=11 // pred_fallthru
          _
        %s150 = sadd.s32 %s54, 2
        %s151 = sld [smem:[#allocation4 + %s150]]
        %s152 = scalar_lea.vmem %s1, %s151
        %s153 = scalar_lea.vmem %s53, 2 [#allocation5]
        %s154 = scalar_lea.sflag [#allocation2], 2
        %p156 = scmp.lt.u32.totalorder 1, 8
        %p157 = pneg %p156
        // Predicated region
        $region73: #{tpu_custom_call.1} parent=11 // pred_check
          _
        $region74: #{tpu_custom_call.1} parent=11 // pred_check_branch
          %159 = sbr.rel (%p156) target = $region76
        $region75: #{tpu_custom_call.1} parent=11 // pred_region
          %s174 = sand.u32 1, 7
          %p175 = scmp.eq.s32.totalorder %s174, 0
          %p176 = pneg %p175
          // Predicated region
          $region88: #{tpu_custom_call.1} parent=75 // pred_check
            _
          $region89: #{tpu_custom_call.1} parent=75 // pred_check_branch
            %178 = sbr.rel (%p175) target = $region91
          $region90: #{tpu_custom_call.1} parent=75 // pred_region
            %s179 = sand.u32 1, 7
            %s180 = ssub.s32 1, %s179
            %s181 = scalar_lea.vmem %s152, %s180
            %s182 = ssub.s32 1, %s179
            %s183 = scalar_lea.vmem %s153, %s182 [#allocation5]
            %s184 = sshllo.u32 0, %s179
            loop: start=0, step=1, limit=1
            $region92: #{tpu_custom_call.1} parent=90 // loop_pre_header
              _
            $region93: #{tpu_custom_call.1} parent=90 // loop_header
              %s186 = sphi 0, %s190
              %p187 = scmp.ge.s32.totalorder %s186, 1
              %s191 = sphi %s181, %s181
              %s192 = sphi %s183, %s183
            $region94: #{tpu_custom_call.1} parent=90 // loop_header_branch
              %189 = sbr.rel (%p187) target = $region98
            $region95: #{tpu_custom_call.1} parent=90 // loop_body
              %v193 = vld [vmem:[%s191] sm:%s184]
              %194 = vst [vmem:[%s192] sm:%s184] %v193
            $region96: #{tpu_custom_call.1} parent=90 // loop_footer
              %s190 = sadd.s32 1, %s186
            $region97: #{tpu_custom_call.1} parent=90 // loop_footer_branch
              %185 = sbr.rel target = $region93
            $region98: #{tpu_custom_call.1} parent=90 // loop_exit
              _
          $region91: #{tpu_custom_call.1} parent=75 // pred_fallthru
            _
        $region76: #{tpu_custom_call.1} parent=11 // pred_fallthru
          _
        // Predicated region
        $region77: #{tpu_custom_call.1} parent=11 // pred_check
          %p160 = pneg %p156
        $region78: #{tpu_custom_call.1} parent=11 // pred_check_branch
          %162 = sbr.rel (%p160) target = $region80
        $region79: #{tpu_custom_call.1} parent=11 // pred_region
          %s163 = sshllo.u32 0, 1
          loop: start=0, step=1, limit=1
          $region81: #{tpu_custom_call.1} parent=79 // loop_pre_header
            _
          $region82: #{tpu_custom_call.1} parent=79 // loop_header
            %s165 = sphi 0, %s169
            %p166 = scmp.ge.s32.totalorder %s165, 1
            %s170 = sphi %s152, %s152
            %s171 = sphi %s153, %s153
          $region83: #{tpu_custom_call.1} parent=79 // loop_header_branch
            %168 = sbr.rel (%p166) target = $region87
          $region84: #{tpu_custom_call.1} parent=79 // loop_body
            %v172 = vld [vmem:[%s170] sm:%s163]
            %173 = vst [vmem:[%s171] sm:%s163] %v172
          $region85: #{tpu_custom_call.1} parent=79 // loop_footer
            %s169 = sadd.s32 1, %s165
          $region86: #{tpu_custom_call.1} parent=79 // loop_footer_branch
            %164 = sbr.rel target = $region82
          $region87: #{tpu_custom_call.1} parent=79 // loop_exit
            _
        $region80: #{tpu_custom_call.1} parent=11 // pred_fallthru
          _
        // Predicated region
        $region99: #{tpu_custom_call.1} parent=11 // pred_check
          _
        $region100: #{tpu_custom_call.1} parent=11 // pred_check_branch
          %197 = sbr.rel (0) target = $region102
        $region101: #{tpu_custom_call.1} parent=11 // pred_region
          %198 = vsyncadd %s154, 16
        $region102: #{tpu_custom_call.1} parent=11 // pred_fallthru
          _
        %s199 = sadd.s32 %s54, 3
        %s200 = sld [smem:[#allocation4 + %s199]]
        %s201 = scalar_lea.vmem %s1, %s200
        %s202 = scalar_lea.vmem %s53, 3 [#allocation5]
        %s203 = scalar_lea.sflag [#allocation2], 3
        %p205 = scmp.lt.u32.totalorder 1, 8
        %p206 = pneg %p205
        // Predicated region
        $region103: #{tpu_custom_call.1} parent=11 // pred_check
          _
        $region104: #{tpu_custom_call.1} parent=11 // pred_check_branch
          %208 = sbr.rel (%p205) target = $region106
        $region105: #{tpu_custom_call.1} parent=11 // pred_region
          %s223 = sand.u32 1, 7
          %p224 = scmp.eq.s32.totalorder %s223, 0
          %p225 = pneg %p224
          // Predicated region
          $region118: #{tpu_custom_call.1} parent=105 // pred_check
            _
          $region119: #{tpu_custom_call.1} parent=105 // pred_check_branch
            %227 = sbr.rel (%p224) target = $region121
          $region120: #{tpu_custom_call.1} parent=105 // pred_region
            %s228 = sand.u32 1, 7
            %s229 = ssub.s32 1, %s228
            %s230 = scalar_lea.vmem %s201, %s229
            %s231 = ssub.s32 1, %s228
            %s232 = scalar_lea.vmem %s202, %s231 [#allocation5]
            %s233 = sshllo.u32 0, %s228
            loop: start=0, step=1, limit=1
            $region122: #{tpu_custom_call.1} parent=120 // loop_pre_header
              _
            $region123: #{tpu_custom_call.1} parent=120 // loop_header
              %s235 = sphi 0, %s239
              %p236 = scmp.ge.s32.totalorder %s235, 1
              %s240 = sphi %s230, %s230
              %s241 = sphi %s232, %s232
            $region124: #{tpu_custom_call.1} parent=120 // loop_header_branch
              %238 = sbr.rel (%p236) target = $region128
            $region125: #{tpu_custom_call.1} parent=120 // loop_body
              %v242 = vld [vmem:[%s240] sm:%s233]
              %243 = vst [vmem:[%s241] sm:%s233] %v242
            $region126: #{tpu_custom_call.1} parent=120 // loop_footer
              %s239 = sadd.s32 1, %s235
            $region127: #{tpu_custom_call.1} parent=120 // loop_footer_branch
              %234 = sbr.rel target = $region123
            $region128: #{tpu_custom_call.1} parent=120 // loop_exit
              _
          $region121: #{tpu_custom_call.1} parent=105 // pred_fallthru
            _
        $region106: #{tpu_custom_call.1} parent=11 // pred_fallthru
          _
        // Predicated region
        $region107: #{tpu_custom_call.1} parent=11 // pred_check
          %p209 = pneg %p205
        $region108: #{tpu_custom_call.1} parent=11 // pred_check_branch
          %211 = sbr.rel (%p209) target = $region110
        $region109: #{tpu_custom_call.1} parent=11 // pred_region
          %s212 = sshllo.u32 0, 1
          loop: start=0, step=1, limit=1
          $region111: #{tpu_custom_call.1} parent=109 // loop_pre_header
            _
          $region112: #{tpu_custom_call.1} parent=109 // loop_header
            %s214 = sphi 0, %s218
            %p215 = scmp.ge.s32.totalorder %s214, 1
            %s219 = sphi %s201, %s201
            %s220 = sphi %s202, %s202
          $region113: #{tpu_custom_call.1} parent=109 // loop_header_branch
            %217 = sbr.rel (%p215) target = $region117
          $region114: #{tpu_custom_call.1} parent=109 // loop_body
            %v221 = vld [vmem:[%s219] sm:%s212]
            %222 = vst [vmem:[%s220] sm:%s212] %v221
          $region115: #{tpu_custom_call.1} parent=109 // loop_footer
            %s218 = sadd.s32 1, %s214
          $region116: #{tpu_custom_call.1} parent=109 // loop_footer_branch
            %213 = sbr.rel target = $region112
          $region117: #{tpu_custom_call.1} parent=109 // loop_exit
            _
        $region110: #{tpu_custom_call.1} parent=11 // pred_fallthru
          _
        // Predicated region
        $region129: #{tpu_custom_call.1} parent=11 // pred_check
          _
        $region130: #{tpu_custom_call.1} parent=11 // pred_check_branch
          %246 = sbr.rel (0) target = $region132
        $region131: #{tpu_custom_call.1} parent=11 // pred_region
          %247 = vsyncadd %s203, 16
        $region132: #{tpu_custom_call.1} parent=11 // pred_fallthru
          _
        %s248 = sadd.s32 %s54, 4
        %s249 = sld [smem:[#allocation4 + %s248]]
        %s250 = scalar_lea.vmem %s1, %s249
        %s251 = scalar_lea.vmem %s53, 4 [#allocation5]
        %s252 = scalar_lea.sflag [#allocation2], 4
        %p254 = scmp.lt.u32.totalorder 1, 8
        %p255 = pneg %p254
        // Predicated region
        $region133: #{tpu_custom_call.1} parent=11 // pred_check
          _
        $region134: #{tpu_custom_call.1} parent=11 // pred_check_branch
          %257 = sbr.rel (%p254) target = $region136
        $region135: #{tpu_custom_call.1} parent=11 // pred_region
          %s272 = sand.u32 1, 7
          %p273 = scmp.eq.s32.totalorder %s272, 0
          %p274 = pneg %p273
          // Predicated region
          $region148: #{tpu_custom_call.1} parent=135 // pred_check
            _
          $region149: #{tpu_custom_call.1} parent=135 // pred_check_branch
            %276 = sbr.rel (%p273) target = $region151
          $region150: #{tpu_custom_call.1} parent=135 // pred_region
            %s277 = sand.u32 1, 7
            %s278 = ssub.s32 1, %s277
            %s279 = scalar_lea.vmem %s250, %s278
            %s280 = ssub.s32 1, %s277
            %s281 = scalar_lea.vmem %s251, %s280 [#allocation5]
            %s282 = sshllo.u32 0, %s277
            loop: start=0, step=1, limit=1
            $region152: #{tpu_custom_call.1} parent=150 // loop_pre_header
              _
            $region153: #{tpu_custom_call.1} parent=150 // loop_header
              %s284 = sphi 0, %s288
              %p285 = scmp.ge.s32.totalorder %s284, 1
              %s289 = sphi %s279, %s279
              %s290 = sphi %s281, %s281
            $region154: #{tpu_custom_call.1} parent=150 // loop_header_branch
              %287 = sbr.rel (%p285) target = $region158
            $region155: #{tpu_custom_call.1} parent=150 // loop_body
              %v291 = vld [vmem:[%s289] sm:%s282]
              %292 = vst [vmem:[%s290] sm:%s282] %v291
            $region156: #{tpu_custom_call.1} parent=150 // loop_footer
              %s288 = sadd.s32 1, %s284
            $region157: #{tpu_custom_call.1} parent=150 // loop_footer_branch
              %283 = sbr.rel target = $region153
            $region158: #{tpu_custom_call.1} parent=150 // loop_exit
              _
          $region151: #{tpu_custom_call.1} parent=135 // pred_fallthru
            _
        $region136: #{tpu_custom_call.1} parent=11 // pred_fallthru
          _
        // Predicated region
        $region137: #{tpu_custom_call.1} parent=11 // pred_check
          %p258 = pneg %p254
        $region138: #{tpu_custom_call.1} parent=11 // pred_check_branch
          %260 = sbr.rel (%p258) target = $region140
        $region139: #{tpu_custom_call.1} parent=11 // pred_region
          %s261 = sshllo.u32 0, 1
          loop: start=0, step=1, limit=1
          $region141: #{tpu_custom_call.1} parent=139 // loop_pre_header
            _
          $region142: #{tpu_custom_call.1} parent=139 // loop_header
            %s263 = sphi 0, %s267
            %p264 = scmp.ge.s32.totalorder %s263, 1
            %s268 = sphi %s250, %s250
            %s269 = sphi %s251, %s251
          $region143: #{tpu_custom_call.1} parent=139 // loop_header_branch
            %266 = sbr.rel (%p264) target = $region147
          $region144: #{tpu_custom_call.1} parent=139 // loop_body
            %v270 = vld [vmem:[%s268] sm:%s261]
            %271 = vst [vmem:[%s269] sm:%s261] %v270
          $region145: #{tpu_custom_call.1} parent=139 // loop_footer
            %s267 = sadd.s32 1, %s263
          $region146: #{tpu_custom_call.1} parent=139 // loop_footer_branch
            %262 = sbr.rel target = $region142
          $region147: #{tpu_custom_call.1} parent=139 // loop_exit
            _
        $region140: #{tpu_custom_call.1} parent=11 // pred_fallthru
          _
        // Predicated region
        $region159: #{tpu_custom_call.1} parent=11 // pred_check
          _
        $region160: #{tpu_custom_call.1} parent=11 // pred_check_branch
          %295 = sbr.rel (0) target = $region162
        $region161: #{tpu_custom_call.1} parent=11 // pred_region
          %296 = vsyncadd %s252, 16
        $region162: #{tpu_custom_call.1} parent=11 // pred_fallthru
          _
        %s297 = sadd.s32 %s54, 5
        %s298 = sld [smem:[#allocation4 + %s297]]
        %s299 = scalar_lea.vmem %s1, %s298
        %s300 = scalar_lea.vmem %s53, 5 [#allocation5]
        %s301 = scalar_lea.sflag [#allocation2], 5
        %p303 = scmp.lt.u32.totalorder 1, 8
        %p304 = pneg %p303
        // Predicated region
        $region163: #{tpu_custom_call.1} parent=11 // pred_check
          _
        $region164: #{tpu_custom_call.1} parent=11 // pred_check_branch
          %306 = sbr.rel (%p303) target = $region166
        $region165: #{tpu_custom_call.1} parent=11 // pred_region
          %s321 = sand.u32 1, 7
          %p322 = scmp.eq.s32.totalorder %s321, 0
          %p323 = pneg %p322
          // Predicated region
          $region178: #{tpu_custom_call.1} parent=165 // pred_check
            _
          $region179: #{tpu_custom_call.1} parent=165 // pred_check_branch
            %325 = sbr.rel (%p322) target = $region181
          $region180: #{tpu_custom_call.1} parent=165 // pred_region
            %s326 = sand.u32 1, 7
            %s327 = ssub.s32 1, %s326
            %s328 = scalar_lea.vmem %s299, %s327
            %s329 = ssub.s32 1, %s326
            %s330 = scalar_lea.vmem %s300, %s329 [#allocation5]
            %s331 = sshllo.u32 0, %s326
            loop: start=0, step=1, limit=1
            $region182: #{tpu_custom_call.1} parent=180 // loop_pre_header
              _
            $region183: #{tpu_custom_call.1} parent=180 // loop_header
              %s333 = sphi 0, %s337
              %p334 = scmp.ge.s32.totalorder %s333, 1
              %s338 = sphi %s328, %s328
              %s339 = sphi %s330, %s330
            $region184: #{tpu_custom_call.1} parent=180 // loop_header_branch
              %336 = sbr.rel (%p334) target = $region188
            $region185: #{tpu_custom_call.1} parent=180 // loop_body
              %v340 = vld [vmem:[%s338] sm:%s331]
              %341 = vst [vmem:[%s339] sm:%s331] %v340
            $region186: #{tpu_custom_call.1} parent=180 // loop_footer
              %s337 = sadd.s32 1, %s333
            $region187: #{tpu_custom_call.1} parent=180 // loop_footer_branch
              %332 = sbr.rel target = $region183
            $region188: #{tpu_custom_call.1} parent=180 // loop_exit
              _
          $region181: #{tpu_custom_call.1} parent=165 // pred_fallthru
            _
        $region166: #{tpu_custom_call.1} parent=11 // pred_fallthru
          _
        // Predicated region
        $region167: #{tpu_custom_call.1} parent=11 // pred_check
          %p307 = pneg %p303
        $region168: #{tpu_custom_call.1} parent=11 // pred_check_branch
          %309 = sbr.rel (%p307) target = $region170
        $region169: #{tpu_custom_call.1} parent=11 // pred_region
          %s310 = sshllo.u32 0, 1
          loop: start=0, step=1, limit=1
          $region171: #{tpu_custom_call.1} parent=169 // loop_pre_header
            _
          $region172: #{tpu_custom_call.1} parent=169 // loop_header
            %s312 = sphi 0, %s316
            %p313 = scmp.ge.s32.totalorder %s312, 1
            %s317 = sphi %s299, %s299
            %s318 = sphi %s300, %s300
          $region173: #{tpu_custom_call.1} parent=169 // loop_header_branch
            %315 = sbr.rel (%p313) target = $region177
          $region174: #{tpu_custom_call.1} parent=169 // loop_body
            %v319 = vld [vmem:[%s317] sm:%s310]
            %320 = vst [vmem:[%s318] sm:%s310] %v319
          $region175: #{tpu_custom_call.1} parent=169 // loop_footer
            %s316 = sadd.s32 1, %s312
          $region176: #{tpu_custom_call.1} parent=169 // loop_footer_branch
            %311 = sbr.rel target = $region172
          $region177: #{tpu_custom_call.1} parent=169 // loop_exit
            _
        $region170: #{tpu_custom_call.1} parent=11 // pred_fallthru
          _
        // Predicated region
        $region189: #{tpu_custom_call.1} parent=11 // pred_check
          _
        $region190: #{tpu_custom_call.1} parent=11 // pred_check_branch
          %344 = sbr.rel (0) target = $region192
        $region191: #{tpu_custom_call.1} parent=11 // pred_region
          %345 = vsyncadd %s301, 16
        $region192: #{tpu_custom_call.1} parent=11 // pred_fallthru
          _
        %s346 = sadd.s32 %s54, 6
        %s347 = sld [smem:[#allocation4 + %s346]]
        %s348 = scalar_lea.vmem %s1, %s347
        %s349 = scalar_lea.vmem %s53, 6 [#allocation5]
        %s350 = scalar_lea.sflag [#allocation2], 6
        %p352 = scmp.lt.u32.totalorder 1, 8
        %p353 = pneg %p352
        // Predicated region
        $region193: #{tpu_custom_call.1} parent=11 // pred_check
          _
        $region194: #{tpu_custom_call.1} parent=11 // pred_check_branch
          %355 = sbr.rel (%p352) target = $region196
        $region195: #{tpu_custom_call.1} parent=11 // pred_region
          %s370 = sand.u32 1, 7
          %p371 = scmp.eq.s32.totalorder %s370, 0
          %p372 = pneg %p371
          // Predicated region
          $region208: #{tpu_custom_call.1} parent=195 // pred_check
            _
          $region209: #{tpu_custom_call.1} parent=195 // pred_check_branch
            %374 = sbr.rel (%p371) target = $region211
          $region210: #{tpu_custom_call.1} parent=195 // pred_region
            %s375 = sand.u32 1, 7
            %s376 = ssub.s32 1, %s375
            %s377 = scalar_lea.vmem %s348, %s376
            %s378 = ssub.s32 1, %s375
            %s379 = scalar_lea.vmem %s349, %s378 [#allocation5]
            %s380 = sshllo.u32 0, %s375
            loop: start=0, step=1, limit=1
            $region212: #{tpu_custom_call.1} parent=210 // loop_pre_header
              _
            $region213: #{tpu_custom_call.1} parent=210 // loop_header
              %s382 = sphi 0, %s386
              %p383 = scmp.ge.s32.totalorder %s382, 1
              %s387 = sphi %s377, %s377
              %s388 = sphi %s379, %s379
            $region214: #{tpu_custom_call.1} parent=210 // loop_header_branch
              %385 = sbr.rel (%p383) target = $region218
            $region215: #{tpu_custom_call.1} parent=210 // loop_body
              %v389 = vld [vmem:[%s387] sm:%s380]
              %390 = vst [vmem:[%s388] sm:%s380] %v389
            $region216: #{tpu_custom_call.1} parent=210 // loop_footer
              %s386 = sadd.s32 1, %s382
            $region217: #{tpu_custom_call.1} parent=210 // loop_footer_branch
              %381 = sbr.rel target = $region213
            $region218: #{tpu_custom_call.1} parent=210 // loop_exit
              _
          $region211: #{tpu_custom_call.1} parent=195 // pred_fallthru
            _
        $region196: #{tpu_custom_call.1} parent=11 // pred_fallthru
          _
        // Predicated region
        $region197: #{tpu_custom_call.1} parent=11 // pred_check
          %p356 = pneg %p352
        $region198: #{tpu_custom_call.1} parent=11 // pred_check_branch
          %358 = sbr.rel (%p356) target = $region200
        $region199: #{tpu_custom_call.1} parent=11 // pred_region
          %s359 = sshllo.u32 0, 1
          loop: start=0, step=1, limit=1
          $region201: #{tpu_custom_call.1} parent=199 // loop_pre_header
            _
          $region202: #{tpu_custom_call.1} parent=199 // loop_header
            %s361 = sphi 0, %s365
            %p362 = scmp.ge.s32.totalorder %s361, 1
            %s366 = sphi %s348, %s348
            %s367 = sphi %s349, %s349
          $region203: #{tpu_custom_call.1} parent=199 // loop_header_branch
            %364 = sbr.rel (%p362) target = $region207
          $region204: #{tpu_custom_call.1} parent=199 // loop_body
            %v368 = vld [vmem:[%s366] sm:%s359]
            %369 = vst [vmem:[%s367] sm:%s359] %v368
          $region205: #{tpu_custom_call.1} parent=199 // loop_footer
            %s365 = sadd.s32 1, %s361
          $region206: #{tpu_custom_call.1} parent=199 // loop_footer_branch
            %360 = sbr.rel target = $region202
          $region207: #{tpu_custom_call.1} parent=199 // loop_exit
            _
        $region200: #{tpu_custom_call.1} parent=11 // pred_fallthru
          _
        // Predicated region
        $region219: #{tpu_custom_call.1} parent=11 // pred_check
          _
        $region220: #{tpu_custom_call.1} parent=11 // pred_check_branch
          %393 = sbr.rel (0) target = $region222
        $region221: #{tpu_custom_call.1} parent=11 // pred_region
          %394 = vsyncadd %s350, 16
        $region222: #{tpu_custom_call.1} parent=11 // pred_fallthru
          _
        %s395 = sadd.s32 %s54, 7
        %s396 = sld [smem:[#allocation4 + %s395]]
        %s397 = scalar_lea.vmem %s1, %s396
        %s398 = scalar_lea.vmem %s53, 7 [#allocation5]
        %s399 = scalar_lea.sflag [#allocation2], 7
        %p401 = scmp.lt.u32.totalorder 1, 8
        %p402 = pneg %p401
        // Predicated region
        $region223: #{tpu_custom_call.1} parent=11 // pred_check
          _
        $region224: #{tpu_custom_call.1} parent=11 // pred_check_branch
          %404 = sbr.rel (%p401) target = $region226
        $region225: #{tpu_custom_call.1} parent=11 // pred_region
          %s419 = sand.u32 1, 7
          %p420 = scmp.eq.s32.totalorder %s419, 0
          %p421 = pneg %p420
          // Predicated region
          $region238: #{tpu_custom_call.1} parent=225 // pred_check
            _
          $region239: #{tpu_custom_call.1} parent=225 // pred_check_branch
            %423 = sbr.rel (%p420) target = $region241
          $region240: #{tpu_custom_call.1} parent=225 // pred_region
            %s424 = sand.u32 1, 7
            %s425 = ssub.s32 1, %s424
            %s426 = scalar_lea.vmem %s397, %s425
            %s427 = ssub.s32 1, %s424
            %s428 = scalar_lea.vmem %s398, %s427 [#allocation5]
            %s429 = sshllo.u32 0, %s424
            loop: start=0, step=1, limit=1
            $region242: #{tpu_custom_call.1} parent=240 // loop_pre_header
              _
            $region243: #{tpu_custom_call.1} parent=240 // loop_header
              %s431 = sphi 0, %s435
              %p432 = scmp.ge.s32.totalorder %s431, 1
              %s436 = sphi %s426, %s426
              %s437 = sphi %s428, %s428
            $region244: #{tpu_custom_call.1} parent=240 // loop_header_branch
              %434 = sbr.rel (%p432) target = $region248
            $region245: #{tpu_custom_call.1} parent=240 // loop_body
              %v438 = vld [vmem:[%s436] sm:%s429]
              %439 = vst [vmem:[%s437] sm:%s429] %v438
            $region246: #{tpu_custom_call.1} parent=240 // loop_footer
              %s435 = sadd.s32 1, %s431
            $region247: #{tpu_custom_call.1} parent=240 // loop_footer_branch
              %430 = sbr.rel target = $region243
            $region248: #{tpu_custom_call.1} parent=240 // loop_exit
              _
          $region241: #{tpu_custom_call.1} parent=225 // pred_fallthru
            _
        $region226: #{tpu_custom_call.1} parent=11 // pred_fallthru
          _
        // Predicated region
        $region227: #{tpu_custom_call.1} parent=11 // pred_check
          %p405 = pneg %p401
        $region228: #{tpu_custom_call.1} parent=11 // pred_check_branch
          %407 = sbr.rel (%p405) target = $region230
        $region229: #{tpu_custom_call.1} parent=11 // pred_region
          %s408 = sshllo.u32 0, 1
          loop: start=0, step=1, limit=1
          $region231: #{tpu_custom_call.1} parent=229 // loop_pre_header
            _
          $region232: #{tpu_custom_call.1} parent=229 // loop_header
            %s410 = sphi 0, %s414
            %p411 = scmp.ge.s32.totalorder %s410, 1
            %s415 = sphi %s397, %s397
            %s416 = sphi %s398, %s398
          $region233: #{tpu_custom_call.1} parent=229 // loop_header_branch
            %413 = sbr.rel (%p411) target = $region237
          $region234: #{tpu_custom_call.1} parent=229 // loop_body
            %v417 = vld [vmem:[%s415] sm:%s408]
            %418 = vst [vmem:[%s416] sm:%s408] %v417
          $region235: #{tpu_custom_call.1} parent=229 // loop_footer
            %s414 = sadd.s32 1, %s410
          $region236: #{tpu_custom_call.1} parent=229 // loop_footer_branch
            %409 = sbr.rel target = $region232
          $region237: #{tpu_custom_call.1} parent=229 // loop_exit
            _
        $region230: #{tpu_custom_call.1} parent=11 // pred_fallthru
          _
        // Predicated region
        $region249: #{tpu_custom_call.1} parent=11 // pred_check
          _
        $region250: #{tpu_custom_call.1} parent=11 // pred_check_branch
          %442 = sbr.rel (0) target = $region252
        $region251: #{tpu_custom_call.1} parent=11 // pred_region
          %443 = vsyncadd %s399, 16
        $region252: #{tpu_custom_call.1} parent=11 // pred_fallthru
          _
        %s444 = smul.u32 1, 1
        %s445 = sshll.u32 %s444, 4
        %446 = dma.done [#allocation2], %s445
        %s447 = sshll.u32 %s444, 4
        %448 = dma.done %s105, %s447
        %s449 = sshll.u32 %s444, 4
        %450 = dma.done %s154, %s449
        %s451 = sshll.u32 %s444, 4
        %452 = dma.done %s203, %s451
        %s453 = sshll.u32 %s444, 4
        %454 = dma.done %s252, %s453
        %s455 = sshll.u32 %s444, 4
        %456 = dma.done %s301, %s455
        %s457 = sshll.u32 %s444, 4
        %458 = dma.done %s350, %s457
        %s459 = sshll.u32 %s444, 4
        %460 = dma.done %s399, %s459
        %s461 = sand.u32 %s26, 1
        %s462 = scalar_lea.sflag [#allocation6], %s461
        %s463 = sand.u32 %s26, 1
        %s464 = smul.addr %s463, 8
        %s465 = scalar_lea.vmem [#allocation5], %s464
        // Predicated region
        $region253: #{tpu_custom_call.1} parent=11 // pred_check
          %p466 = pneg %p32
        $region254: #{tpu_custom_call.1} parent=11 // pred_check_branch
          %468 = sbr.rel (%p466) target = $region256
        $region255: #{tpu_custom_call.1} parent=11 // pred_region
          %s470 = ssub.s32 128, 128
          %471 = vsyncadd %s462, %s470
          %s472 = smul.addr %s17, 128
          %s473 = scalar_lea.hbm %s2, %s472
          %s475 = sshll.u32 %s465, 4
          %s476 = int_to_ptr.vmem [resolvable:$true] %s475
          %478 = dma.vmem_to_hbm [thread:$0]  %s476, 128, %s473, %s462
        $region256: #{tpu_custom_call.1} parent=11 // pred_fallthru
          _
      $region12: #{tpu_custom_call.1} parent=5 // pred_fallthru
        _
      %p479 = scmp.le.s32.totalorder 1, %s17
      // Predicated region
      $region257: #{tpu_custom_call.1} parent=5 // pred_check
        %p480 = pneg %p479
      $region258: #{tpu_custom_call.1} parent=5 // pred_check_branch
        %482 = sbr.rel (%p480) target = $region260
      $region259: #{tpu_custom_call.1} parent=5 // pred_region
        %s483 = ssub.s32 %s17, 1
        // Predicated region
        $region261: #{tpu_custom_call.1} parent=259 // pred_check
          %p484 = pneg %p38
        $region262: #{tpu_custom_call.1} parent=259 // pred_check_branch
          %486 = sbr.rel (%p484) target = $region264
        $region263: #{tpu_custom_call.1} parent=259 // pred_region
          %s487 = sand.u32 %s29, 1
          %s488 = scalar_lea.sflag [#allocation6], %s487
          %s489 = sand.u32 %s29, 1
          %s490 = smul.addr %s489, 8
          %s491 = scalar_lea.vmem [#allocation5], %s490
          %492 = dma.done %s488, 128
        $region264: #{tpu_custom_call.1} parent=259 // pred_fallthru
          _
      $region260: #{tpu_custom_call.1} parent=5 // pred_fallthru
        _
    $region6: #{tpu_custom_call.1} parent=1 // loop_footer
      %s21 = sadd.s32 1, %s17
    $region7: #{tpu_custom_call.1} parent=1 // loop_footer_branch
      %16 = sbr.rel target = $region3
    $region8: #{tpu_custom_call.1} parent=1 // loop_exit
      _
    %493 = vsyncpa [#allocation6], 1
    %s494 = scalar_lea.sflag [#allocation6], 1
    %495 = vsyncpa %s494, 1
  %496 = vsyncmov [#allocation2]
  %s497 = vpop.sfrf %496
  %p498 = scmp.eq.s32.totalorder %s497, 0
  %p499 = pneg %p498
  %501 = shalt.err (%p499)
  %s502 = scalar_lea.sflag [#allocation2], 1
  %503 = vsyncmov %s502
  %s504 = vpop.sfrf %503
  %p505 = scmp.eq.s32.totalorder %s504, 0
  %p506 = pneg %p505
  %508 = shalt.err (%p506)
  %s509 = scalar_lea.sflag [#allocation2], 2
  %510 = vsyncmov %s509
  %s511 = vpop.sfrf %510
  %p512 = scmp.eq.s32.totalorder %s511, 0
  %p513 = pneg %p512
  %515 = shalt.err (%p513)
  %s516 = scalar_lea.sflag [#allocation2], 3
  %517 = vsyncmov %s516
  %s518 = vpop.sfrf %517
  %p519 = scmp.eq.s32.totalorder %s518, 0
  %p520 = pneg %p519
  %522 = shalt.err (%p520)
  %s523 = scalar_lea.sflag [#allocation2], 4
  %524 = vsyncmov %s523
  %s525 = vpop.sfrf %524
  %p526 = scmp.eq.s32.totalorder %s525, 0
  %p527 = pneg %p526
  %529 = shalt.err (%p527)
  %s530 = scalar_lea.sflag [#allocation2], 5
  %531 = vsyncmov %s530
  %s532 = vpop.sfrf %531
  %p533 = scmp.eq.s32.totalorder %s532, 0
  %p534 = pneg %p533
  %536 = shalt.err (%p534)
  %s537 = scalar_lea.sflag [#allocation2], 6
  %538 = vsyncmov %s537
  %s539 = vpop.sfrf %538
  %p540 = scmp.eq.s32.totalorder %s539, 0
  %p541 = pneg %p540
  %543 = shalt.err (%p541)
  %s544 = scalar_lea.sflag [#allocation2], 7
  %545 = vsyncmov %s544
  %s546 = vpop.sfrf %545
  %p547 = scmp.eq.s32.totalorder %s546, 0
  %p548 = pneg %p547
  %550 = shalt.err (%p548)

</llo_original>
